<compile_context>
chip_gen: v5e
topology: v5e:2x2
jax: 0.10.0
libtpu: 0.0.40
codegen_flags: <defaults>
</compile_context>

<pallas_src>
import jax
import jax.numpy as jnp
from jax.experimental import pallas as pl
from jax.experimental.pallas import tpu as pltpu


def _round_up(x, m):
    return (x + m - 1) // m * m


def fc_extractor_kernel(x_ref, w1_ref, b1_ref, w2_ref, b2_ref, wr_ref, br_ref,
                        pred_ref, feat_ref):
    # x_ref: (TILE_N, F_pad) bf16 tile of flattened roi features.
    x = x_ref[...]

    # fc1 + ReLU (bf16 MXU matmul, f32 accumulation / bias / ReLU).
    h1 = jnp.dot(x, w1_ref[...], preferred_element_type=jnp.float32)
    h1 = jnp.maximum(h1 + b1_ref[...], 0.0)

    # fc2 + ReLU
    h2 = jnp.dot(h1.astype(jnp.bfloat16), w2_ref[...],
                 preferred_element_type=jnp.float32)
    h2 = jnp.maximum(h2 + b2_ref[...], 0.0)

    # fc_reg (dim + latent regression head, lane-padded output width)
    pred = jnp.dot(h2.astype(jnp.bfloat16), wr_ref[...],
                   preferred_element_type=jnp.float32)
    pred = pred + br_ref[...]

    feat_ref[...] = h2.astype(feat_ref.dtype)
    pred_ref[...] = pred.astype(pred_ref.dtype)


def fc_extractor_forward(x_nchw, params, *, tile_n=128):
    """Forward pass of FCExtractor.

    Args:
      x_nchw: (N, C, H, W) roi features.
      params: dict with w1 (F, H1), b1 (1, H1), w2 (H1, H1), b2 (1, H1),
              w_reg (H1, R), b_reg (1, R).  Linear weights are stored as
              (in_features, out_features), i.e. transposed vs nn.Linear.

    Returns:
      (dim_latent_pred, dim_latent_var, distance_pred, distance_logstd, x)
      matching the PyTorch module's return signature.
    """
    n = x_nchw.shape[0]
    flat_dim = x_nchw.shape[1] * x_nchw.shape[2] * x_nchw.shape[3]
    # Glue: flatten(1) in torch (C-order); dropout2d is identity in eval mode.
    x_flat = x_nchw.reshape(n, flat_dim)

    w1, b1 = params["w1"], params["b1"]
    w2, b2 = params["w2"], params["b2"]
    wr, br = params["w_reg"], params["b_reg"]

    h1_dim = w1.shape[1]
    r = wr.shape[1]

    # Lane-align feature / hidden / regression widths; sublane/tile-align N.
    f_pad = _round_up(flat_dim, 128)
    h_pad = _round_up(h1_dim, 128)
    r_pad = _round_up(r, 128)
    tile_n = min(tile_n, _round_up(max(n, 1), 8))
    n_pad = _round_up(max(n, 1), tile_n)

    x_p = jnp.pad(x_flat.astype(jnp.float32),
                  ((0, n_pad - n), (0, f_pad - flat_dim)))
    w1_p = jnp.pad(w1.astype(jnp.float32),
                   ((0, f_pad - flat_dim), (0, h_pad - h1_dim)))
    b1_p = jnp.pad(b1.astype(jnp.float32), ((0, 0), (0, h_pad - h1_dim)))
    w2_p = jnp.pad(w2.astype(jnp.float32),
                   ((0, h_pad - h1_dim), (0, h_pad - h1_dim)))
    b2_p = jnp.pad(b2.astype(jnp.float32), ((0, 0), (0, h_pad - h1_dim)))
    wr_p = jnp.pad(wr.astype(jnp.float32),
                   ((0, h_pad - h1_dim), (0, r_pad - r)))
    br_p = jnp.pad(br.astype(jnp.float32), ((0, 0), (0, r_pad - r)))

    # bf16 weight/activation stream (halves HBM bytes, bf16 MXU path);
    # biases and accumulation stay f32.
    x_bf = x_p.astype(jnp.bfloat16)
    w1_bf = w1_p.astype(jnp.bfloat16)
    w2_bf = w2_p.astype(jnp.bfloat16)
    wr_bf = wr_p.astype(jnp.bfloat16)

    grid = (n_pad // tile_n,)

    # VMEM budget: resident weights + sublane-padded biases + double-buffered
    # x / output tiles, with headroom.  Cap at 64 MiB (v7x physical per-TC).
    weight_bytes = (f_pad * h_pad + h_pad * h_pad + h_pad * r_pad) * 2
    bias_bytes = 3 * 8 * max(h_pad, r_pad) * 4
    io_bytes = 2 * tile_n * (f_pad * 2 + (r_pad + h_pad) * 4)
    vmem_limit = int(min(max(2 * (weight_bytes + bias_bytes + io_bytes),
                             32 << 20), 64 << 20))

    cost = pl.CostEstimate(
        flops=2 * n_pad * (f_pad * h_pad + h_pad * h_pad + h_pad * r_pad),
        transcendentals=0,
        bytes_accessed=(n_pad * f_pad * 2 + weight_bytes
                        + (2 * h_pad + r_pad) * 4
                        + n_pad * (r_pad + h_pad) * 4),
    )

    pred, feat = pl.pallas_call(
        fc_extractor_kernel,
        out_shape=(
            jax.ShapeDtypeStruct((n_pad, r_pad), jnp.float32),
            jax.ShapeDtypeStruct((n_pad, h_pad), jnp.float32),
        ),
        grid_spec=pltpu.PrefetchScalarGridSpec(
            num_scalar_prefetch=0,
            grid=grid,
            in_specs=[
                pl.BlockSpec((tile_n, f_pad), lambda i: (i, 0)),  # x tile
                pl.BlockSpec((f_pad, h_pad), lambda i: (0, 0)),   # w1 resident
                pl.BlockSpec((1, h_pad), lambda i: (0, 0)),       # b1
                pl.BlockSpec((h_pad, h_pad), lambda i: (0, 0)),   # w2 resident
                pl.BlockSpec((1, h_pad), lambda i: (0, 0)),       # b2
                pl.BlockSpec((h_pad, r_pad), lambda i: (0, 0)),   # w_reg
                pl.BlockSpec((1, r_pad), lambda i: (0, 0)),       # b_reg
            ],
            out_specs=[
                pl.BlockSpec((tile_n, r_pad), lambda i: (i, 0)),
                pl.BlockSpec((tile_n, h_pad), lambda i: (i, 0)),
            ],
        ),
        compiler_params=pltpu.CompilerParams(
            dimension_semantics=("parallel",),
            vmem_limit_bytes=vmem_limit,
        ),
        cost_estimate=cost,
    )(x_bf, w1_bf, b1_p, w2_bf, b2_p, wr_bf, br_p)

    dim_latent_pred = pred[:n, :r]
    feat_out = feat[:n, :h1_dim]

    dim_latent_var = None
    distance_pred = None
    distance_logstd = None
    return dim_latent_pred, dim_latent_var, distance_pred, distance_logstd, feat_out


def init_params(key, in_channels, roi_feat_size, fc_out_channels,
                latent_channels, num_classes, dim_dim=3,
                latent_class_agnostic=False):
    """Deterministic parameter init mirroring FCExtractor.init_weights()."""
    roi_feat_area = roi_feat_size * roi_feat_size
    flat_dim = in_channels * roi_feat_area
    out_dim_reg = dim_dim + latent_channels
    if not latent_class_agnostic:
        out_dim_reg *= num_classes

    keys = jax.random.split(key, 6)

    def xavier_uniform(k, fan_in, fan_out, gain):
        limit = gain * jnp.sqrt(6.0 / (fan_in + fan_out))
        # stored as (in, out)
        return jax.random.uniform(k, (fan_in, fan_out), jnp.float32,
                                  minval=-limit, maxval=limit)

    params = {
        "w1": xavier_uniform(keys[0], flat_dim, fc_out_channels, 0.33),
        "b1": (0.02 + 0.04 * jax.random.normal(keys[1], (1, fc_out_channels))
               ).astype(jnp.float32),
        "w2": xavier_uniform(keys[2], fc_out_channels, fc_out_channels, 0.33),
        "b2": (0.02 + 0.04 * jax.random.normal(keys[3], (1, fc_out_channels))
               ).astype(jnp.float32),
        "w_reg": (0.001 * jax.random.normal(
            keys[4], (fc_out_channels, out_dim_reg))).astype(jnp.float32),
        "b_reg": jnp.zeros((1, out_dim_reg), jnp.float32),
    }
    return params


if __name__ == "__main__":
    # Small, FCExtractor-consistent shapes:
    #   N=8 rois, in_channels=16, roi_feat_size=7 -> flat dim 784
    #   fc_out_channels=128, latent_channels=16, num_classes=3 -> reg dim 57
    N = 8
    IN_CHANNELS = 16
    ROI = 7
    FC_OUT = 128
    LATENT = 16
    NUM_CLASSES = 3

    key = jax.random.PRNGKey(0)
    k_x, k_p = jax.random.split(key)

    x = jax.random.normal(k_x, (N, IN_CHANNELS, ROI, ROI), jnp.float32)
    params = init_params(k_p, IN_CHANNELS, ROI, FC_OUT, LATENT, NUM_CLASSES)

    outs = fc_extractor_forward(x, params)
    dim_latent_pred, dim_latent_var, distance_pred, distance_logstd, feat = outs

    jax.block_until_ready(dim_latent_pred)
    jax.block_until_ready(feat)

    # Pure-JAX reference with the same bf16-weight / f32-accumulate recipe.
    def bf(a):
        return a.astype(jnp.bfloat16).astype(jnp.float32)

    x_flat = x.reshape(N, -1)
    h1_ref = jnp.maximum(bf(x_flat) @ bf(params["w1"]) + params["b1"], 0.0)
    h2_ref = jnp.maximum(bf(h1_ref) @ bf(params["w2"]) + params["b2"], 0.0)
    pred_ref = bf(h2_ref) @ bf(params["w_reg"]) + params["b_reg"]

    assert dim_latent_pred.shape == (N, (3 + LATENT) * NUM_CLASSES)
    assert feat.shape == (N, FC_OUT)
    assert jnp.allclose(dim_latent_pred, pred_ref, atol=2e-2, rtol=2e-2)
    assert jnp.allclose(feat, h2_ref, atol=2e-2, rtol=2e-2)
    assert dim_latent_var is None and distance_pred is None
    assert distance_logstd is None

    print("KERNEL_OK")
</pallas_src>

<mosaic_0001>
module attributes {stable_mosaic.version = 11 : i64} {
  func.func @fc_extractor_kernel(%arg0: i32, %arg1: memref<8x896xbf16, #tpu.memory_space<vmem>>, %arg2: memref<896x128xbf16, #tpu.memory_space<vmem>>, %arg3: memref<1x128xf32, #tpu.memory_space<vmem>>, %arg4: memref<128x128xbf16, #tpu.memory_space<vmem>>, %arg5: memref<1x128xf32, #tpu.memory_space<vmem>>, %arg6: memref<128x128xbf16, #tpu.memory_space<vmem>>, %arg7: memref<1x128xf32, #tpu.memory_space<vmem>>, %arg8: memref<8x128xf32, #tpu.memory_space<vmem>>, %arg9: memref<8x128xf32, #tpu.memory_space<vmem>>) attributes {dimension_semantics = [#tpu.dimension_semantics<parallel>], iteration_bounds = array<i64: 1>, scalar_prefetch = 0 : i64, scratch_operands = 0 : i64, tpu.core_type = #tpu.core_type<tc>, window_params = [{transform_indices = @transform_0, window_bounds = array<i64: 8, 896>}, {pipeline_mode = #tpu.pipeline_mode<synchronous>, transform_indices = @transform_1, window_bounds = array<i64: 896, 128>}, {pipeline_mode = #tpu.pipeline_mode<synchronous>, transform_indices = @transform_2, window_bounds = array<i64: 1, 128>}, {pipeline_mode = #tpu.pipeline_mode<synchronous>, transform_indices = @transform_3, window_bounds = array<i64: 128, 128>}, {pipeline_mode = #tpu.pipeline_mode<synchronous>, transform_indices = @transform_4, window_bounds = array<i64: 1, 128>}, {pipeline_mode = #tpu.pipeline_mode<synchronous>, transform_indices = @transform_5, window_bounds = array<i64: 128, 128>}, {pipeline_mode = #tpu.pipeline_mode<synchronous>, transform_indices = @transform_6, window_bounds = array<i64: 1, 128>}, {transform_indices = @transform_7, window_bounds = array<i64: 8, 128>}, {transform_indices = @transform_8, window_bounds = array<i64: 8, 128>}]} {
    %c0 = arith.constant 0 : index
    %c0_0 = arith.constant 0 : index
    %0 = vector.load %arg1[%c0, %c0_0] : memref<8x896xbf16, #tpu.memory_space<vmem>>, vector<8x896xbf16>
    %c0_1 = arith.constant 0 : index
    %c0_2 = arith.constant 0 : index
    %1 = vector.load %arg2[%c0_1, %c0_2] : memref<896x128xbf16, #tpu.memory_space<vmem>>, vector<896x128xbf16>
    %cst = arith.constant dense<0.000000e+00> : vector<8x128xf32>
    %2 = tpu.matmul %0, %1, %cst {dimension_numbers = #tpu.dot_dimension_numbers<[1], [0], [0], [1], [0, 0, 1, 1], [], []>} : vector<8x896xbf16>, vector<896x128xbf16>, vector<8x128xf32> -> vector<8x128xf32>
    %c0_3 = arith.constant 0 : index
    %c0_4 = arith.constant 0 : index
    %3 = vector.load %arg3[%c0_3, %c0_4] : memref<1x128xf32, #tpu.memory_space<vmem>>, vector<1x128xf32>
    %4 = vector.broadcast %3 : vector<1x128xf32> to vector<8x128xf32>
    %5 = arith.addf %2, %4 : vector<8x128xf32>
    %cst_5 = arith.constant 0.000000e+00 : f32
    %6 = vector.broadcast %cst_5 : f32 to vector<8x128xf32>
    %7 = arith.maximumf %5, %6 : vector<8x128xf32>
    %8 = arith.truncf %7 : vector<8x128xf32> to vector<8x128xbf16>
    %c0_6 = arith.constant 0 : index
    %c0_7 = arith.constant 0 : index
    %9 = vector.load %arg4[%c0_6, %c0_7] : memref<128x128xbf16, #tpu.memory_space<vmem>>, vector<128x128xbf16>
    %cst_8 = arith.constant dense<0.000000e+00> : vector<8x128xf32>
    %10 = tpu.matmul %8, %9, %cst_8 {dimension_numbers = #tpu.dot_dimension_numbers<[1], [0], [0], [1], [0, 0, 1, 1], [], []>} : vector<8x128xbf16>, vector<128x128xbf16>, vector<8x128xf32> -> vector<8x128xf32>
    %c0_9 = arith.constant 0 : index
    %c0_10 = arith.constant 0 : index
    %11 = vector.load %arg5[%c0_9, %c0_10] : memref<1x128xf32, #tpu.memory_space<vmem>>, vector<1x128xf32>
    %12 = vector.broadcast %11 : vector<1x128xf32> to vector<8x128xf32>
    %13 = arith.addf %10, %12 : vector<8x128xf32>
    %cst_11 = arith.constant 0.000000e+00 : f32
    %14 = vector.broadcast %cst_11 : f32 to vector<8x128xf32>
    %15 = arith.maximumf %13, %14 : vector<8x128xf32>
    %16 = arith.truncf %15 : vector<8x128xf32> to vector<8x128xbf16>
    %c0_12 = arith.constant 0 : index
    %c0_13 = arith.constant 0 : index
    %17 = vector.load %arg6[%c0_12, %c0_13] : memref<128x128xbf16, #tpu.memory_space<vmem>>, vector<128x128xbf16>
    %cst_14 = arith.constant dense<0.000000e+00> : vector<8x128xf32>
    %18 = tpu.matmul %16, %17, %cst_14 {dimension_numbers = #tpu.dot_dimension_numbers<[1], [0], [0], [1], [0, 0, 1, 1], [], []>} : vector<8x128xbf16>, vector<128x128xbf16>, vector<8x128xf32> -> vector<8x128xf32>
    %c0_15 = arith.constant 0 : index
    %c0_16 = arith.constant 0 : index
    %19 = vector.load %arg7[%c0_15, %c0_16] : memref<1x128xf32, #tpu.memory_space<vmem>>, vector<1x128xf32>
    %20 = vector.broadcast %19 : vector<1x128xf32> to vector<8x128xf32>
    %21 = arith.addf %18, %20 : vector<8x128xf32>
    %c0_17 = arith.constant 0 : index
    %c0_18 = arith.constant 0 : index
    %22 = vector.load %arg9[%c0_17, %c0_18] : memref<8x128xf32, #tpu.memory_space<vmem>>, vector<8x128xf32>
    tpu.vector_store %arg9[%c0_17, %c0_18], %15 {strides = array<i32>} : memref<8x128xf32, #tpu.memory_space<vmem>>, vector<8x128xf32>,
    %c0_19 = arith.constant 0 : index
    %c0_20 = arith.constant 0 : index
    %23 = vector.load %arg8[%c0_19, %c0_20] : memref<8x128xf32, #tpu.memory_space<vmem>>, vector<8x128xf32>
    tpu.vector_store %arg8[%c0_19, %c0_20], %21 {strides = array<i32>} : memref<8x128xf32, #tpu.memory_space<vmem>>, vector<8x128xf32>,
    return
  }
  func.func @transform_0(%arg0: i32) -> (i32, i32) {
    %c0_i32 = arith.constant 0 : i32
    %c0_i32_0 = arith.constant 0 : i32
    return %arg0, %c0_i32 : i32, i32
  }
  func.func @transform_1(%arg0: i32) -> (i32, i32) {
    %c0_i32 = arith.constant 0 : i32
    %c0_i32_0 = arith.constant 0 : i32
    %c0_i32_1 = arith.constant 0 : i32
    return %c0_i32, %c0_i32_0 : i32, i32
  }
  func.func @transform_2(%arg0: i32) -> (i32, i32) {
    %c0_i32 = arith.constant 0 : i32
    %c0_i32_0 = arith.constant 0 : i32
    %c0_i32_1 = arith.constant 0 : i32
    return %c0_i32, %c0_i32_0 : i32, i32
  }
  func.func @transform_3(%arg0: i32) -> (i32, i32) {
    %c0_i32 = arith.constant 0 : i32
    %c0_i32_0 = arith.constant 0 : i32
    %c0_i32_1 = arith.constant 0 : i32
    return %c0_i32, %c0_i32_0 : i32, i32
  }
  func.func @transform_4(%arg0: i32) -> (i32, i32) {
    %c0_i32 = arith.constant 0 : i32
    %c0_i32_0 = arith.constant 0 : i32
    %c0_i32_1 = arith.constant 0 : i32
    return %c0_i32, %c0_i32_0 : i32, i32
  }
  func.func @transform_5(%arg0: i32) -> (i32, i32) {
    %c0_i32 = arith.constant 0 : i32
    %c0_i32_0 = arith.constant 0 : i32
    %c0_i32_1 = arith.constant 0 : i32
    return %c0_i32, %c0_i32_0 : i32, i32
  }
  func.func @transform_6(%arg0: i32) -> (i32, i32) {
    %c0_i32 = arith.constant 0 : i32
    %c0_i32_0 = arith.constant 0 : i32
    %c0_i32_1 = arith.constant 0 : i32
    return %c0_i32, %c0_i32_0 : i32, i32
  }
  func.func @transform_7(%arg0: i32) -> (i32, i32) {
    %c0_i32 = arith.constant 0 : i32
    %c0_i32_0 = arith.constant 0 : i32
    return %arg0, %c0_i32 : i32, i32
  }
  func.func @transform_8(%arg0: i32) -> (i32, i32) {
    %c0_i32 = arith.constant 0 : i32
    %c0_i32_0 = arith.constant 0 : i32
    return %arg0, %c0_i32 : i32, i32
  }
}

</mosaic_0001>

<llo_original>
// kernel: tpu_custom_call.1
$region0: #{tpu_custom_call.1}
  #allocation0 [shape = 'u32[]', space=smem, size = 0x4, offset = 0x4, fixed_abs, tag = 'smem constant byte address 0x4 - core index']
  #allocation1 [shape = 'u32[72,128]{1,0:T(1,128)}', space=vmem, size = 0x9000, scoped, tag = 'internal scratch']
  %s0 = inlined_call_operand.hbm [shape: bf16[8,896], index: 0, kind: input, shape index: {}]
  %s1 = inlined_call_operand.hbm [shape: bf16[896,128], index: 1, kind: input, shape index: {}]
  %s2 = inlined_call_operand.vmem [shape: f32[1,128], index: 2, kind: input, shape index: {}]
  %s3 = inlined_call_operand.hbm [shape: bf16[128,128], index: 3, kind: input, shape index: {}]
  %s4 = inlined_call_operand.vmem [shape: f32[1,128], index: 4, kind: input, shape index: {}]
  %s5 = inlined_call_operand.hbm [shape: bf16[128,128], index: 5, kind: input, shape index: {}]
  %s6 = inlined_call_operand.vmem [shape: f32[1,128], index: 6, kind: input, shape index: {}]
  %s7 = inlined_call_operand.hbm [shape: f32[8,128], index: 7, kind: output, shape index: {0}]
  %s8 = inlined_call_operand.hbm [shape: f32[8,128], index: 8, kind: output, shape index: {1}]
  %9 = xla_tuple %s7, %s8
  %s10 = sld [smem:[#allocation0]]
  $region62: #{tpu_custom_call.1} parent=0
    _
  %s12 = ssub.s32 1, %s10
  %s13 = scalar_select 0, %s12, %s10
  $region1: #{tpu_custom_call.1} parent=0
    #allocation2 [shape = 'u8[14336]{0}', space=vmem, size = 0x3800, scoped, tag = 'input window, operand 0, single buffered']
    #allocation3 [shape = 's32[1]{0}', space=sflag, size = 0x4, scoped, tag = 'scoped memory for tpu_custom_call.1']
    #allocation4 [shape = 's32[1]{0}', space=sflag, size = 0x4, scoped, tag = 'scoped memory for tpu_custom_call.1']
    #allocation5 [shape = 'u8[229376]{0}', space=vmem, size = 0x38000, scoped, tag = 'input window, operand 1, single buffered']
    #allocation6 [shape = 's32[1]{0}', space=sflag, size = 0x4, scoped, tag = 'scoped memory for tpu_custom_call.1']
    #allocation7 [shape = 'u8[32768]{0}', space=vmem, size = 0x8000, scoped, tag = 'input window, operand 3, single buffered']
    #allocation8 [shape = 'u8[32768]{0}', space=vmem, size = 0x8000, scoped, tag = 'input window, operand 5, single buffered']
    #allocation9 [shape = 's32[1]{0}', space=sflag, size = 0x4, scoped, tag = 'scoped memory for tpu_custom_call.1']
    #allocation10 [shape = 'u8[4096]{0}', space=vmem, size = 0x1000, scoped, tag = 'output window, operand 0, single buffered']
    #allocation11 [shape = 'u8[4096]{0}', space=vmem, size = 0x1000, scoped, tag = 'output window, operand 1, single buffered']
    #allocation12 [shape = 's32[1]{0}', space=sflag, size = 0x4, scoped, tag = 'scoped memory for tpu_custom_call.1']
    %14 = vsyncpa [#allocation3], 0
    %15 = vsyncpa [#allocation6], 0
    %16 = vsyncpa [#allocation9], 0
    %17 = vsyncpa [#allocation4], 0
    %18 = vsyncpa [#allocation12], 0
    // Predicated region
    $region2: #{tpu_custom_call.1} parent=1 // pred_check
      _
    $region3: #{tpu_custom_call.1} parent=1 // pred_check_branch
      %20 = sbr.rel (0) target = $region5
    $region4: #{tpu_custom_call.1} parent=1 // pred_region
      %22 = vsyncadd [#allocation3], 0
      %s24 = sshll.u32 %s0, 4
      %s25 = int_to_ptr.hbm [resolvable:$true] %s24
      %s26 = sshll.u32 [#allocation2], 4
      %s27 = int_to_ptr.vmem [resolvable:$true] %s26
      %29 = dma.hbm_to_vmem [thread:$0]  %s25, 448, %s27, [#allocation3]
    $region5: #{tpu_custom_call.1} parent=1 // pred_fallthru
      _
    // Predicated region
    $region6: #{tpu_custom_call.1} parent=1 // pred_check
      _
    $region7: #{tpu_custom_call.1} parent=1 // pred_check_branch
      %31 = sbr.rel (0) target = $region9
    $region8: #{tpu_custom_call.1} parent=1 // pred_region
      %33 = vsyncadd [#allocation6], 0
      %s34 = sshll.u32 %s1, 4
      %s35 = int_to_ptr.hbm [resolvable:$true] %s34
      %s36 = sshll.u32 [#allocation5], 4
      %s37 = int_to_ptr.vmem [resolvable:$true] %s36
      %42 = dma.hbm_to_vmem [thread:$0]  %s35, 7168, %s37, [#allocation6], 64, 64, 4
    $region9: #{tpu_custom_call.1} parent=1 // pred_fallthru
      _
    // Predicated region
    $region10: #{tpu_custom_call.1} parent=1 // pred_check
      _
    $region11: #{tpu_custom_call.1} parent=1 // pred_check_branch
      %44 = sbr.rel (0) target = $region13
    $region12: #{tpu_custom_call.1} parent=1 // pred_region
      _
    $region13: #{tpu_custom_call.1} parent=1 // pred_fallthru
      _
    // Predicated region
    $region14: #{tpu_custom_call.1} parent=1 // pred_check
      _
    $region15: #{tpu_custom_call.1} parent=1 // pred_check_branch
      %46 = sbr.rel (0) target = $region17
    $region16: #{tpu_custom_call.1} parent=1 // pred_region
      %48 = vsyncadd [#allocation6], 0
      %s49 = sshll.u32 %s3, 4
      %s50 = int_to_ptr.hbm [resolvable:$true] %s49
      %s51 = sshll.u32 [#allocation7], 4
      %s52 = int_to_ptr.vmem [resolvable:$true] %s51
      %57 = dma.hbm_to_vmem [thread:$0]  %s50, 1024, %s52, [#allocation6], 64, 64, 4
    $region17: #{tpu_custom_call.1} parent=1 // pred_fallthru
      _
    // Predicated region
    $region18: #{tpu_custom_call.1} parent=1 // pred_check
      _
    $region19: #{tpu_custom_call.1} parent=1 // pred_check_branch
      %59 = sbr.rel (0) target = $region21
    $region20: #{tpu_custom_call.1} parent=1 // pred_region
      _
    $region21: #{tpu_custom_call.1} parent=1 // pred_fallthru
      _
    // Predicated region
    $region22: #{tpu_custom_call.1} parent=1 // pred_check
      _
    $region23: #{tpu_custom_call.1} parent=1 // pred_check_branch
      %61 = sbr.rel (0) target = $region25
    $region24: #{tpu_custom_call.1} parent=1 // pred_region
      %63 = vsyncadd [#allocation9], 0
      %s64 = sshll.u32 %s5, 4
      %s65 = int_to_ptr.hbm [resolvable:$true] %s64
      %s66 = sshll.u32 [#allocation8], 4
      %s67 = int_to_ptr.vmem [resolvable:$true] %s66
      %72 = dma.hbm_to_vmem [thread:$0]  %s65, 1024, %s67, [#allocation9], 64, 64, 4
    $region25: #{tpu_custom_call.1} parent=1 // pred_fallthru
      _
    // Predicated region
    $region26: #{tpu_custom_call.1} parent=1 // pred_check
      _
    $region27: #{tpu_custom_call.1} parent=1 // pred_check_branch
      %74 = sbr.rel (0) target = $region29
    $region28: #{tpu_custom_call.1} parent=1 // pred_region
      _
    $region29: #{tpu_custom_call.1} parent=1 // pred_fallthru
      _
    // Predicated region
    $region30: #{tpu_custom_call.1} parent=1 // pred_check
      _
    $region31: #{tpu_custom_call.1} parent=1 // pred_check_branch
      %76 = sbr.rel (0) target = $region33
    $region32: #{tpu_custom_call.1} parent=1 // pred_region
      %78 = dma.done [#allocation3], 448
    $region33: #{tpu_custom_call.1} parent=1 // pred_fallthru
      _
    // Predicated region
    $region34: #{tpu_custom_call.1} parent=1 // pred_check
      _
    $region35: #{tpu_custom_call.1} parent=1 // pred_check_branch
      %80 = sbr.rel (0) target = $region37
    $region36: #{tpu_custom_call.1} parent=1 // pred_region
      %82 = dma.done [#allocation6], 7168
    $region37: #{tpu_custom_call.1} parent=1 // pred_fallthru
      _
    // Predicated region
    $region38: #{tpu_custom_call.1} parent=1 // pred_check
      _
    $region39: #{tpu_custom_call.1} parent=1 // pred_check_branch
      %84 = sbr.rel (0) target = $region41
    $region40: #{tpu_custom_call.1} parent=1 // pred_region
      %86 = dma.done [#allocation6], 1024
    $region41: #{tpu_custom_call.1} parent=1 // pred_fallthru
      _
    // Predicated region
    $region42: #{tpu_custom_call.1} parent=1 // pred_check
      _
    $region43: #{tpu_custom_call.1} parent=1 // pred_check_branch
      %88 = sbr.rel (0) target = $region45
    $region44: #{tpu_custom_call.1} parent=1 // pred_region
      %90 = dma.done [#allocation9], 1024
    $region45: #{tpu_custom_call.1} parent=1 // pred_fallthru
      _
    %v91 = vld [vmem:[#allocation2] sm:$0xff]
    %v92 = vld [vmem:[#allocation2 + $0x8] sm:$0xff]
    %v93 = vld [vmem:[#allocation2 + $0x10] sm:$0xff]
    %v94 = vld [vmem:[#allocation2 + $0x18] sm:$0xf]
    %v95 = vld [vmem:[#allocation5] sm:$0xf]
    %v96 = vld [vmem:[#allocation5 + $0x4] sm:$0xf]
    %v97 = vld [vmem:[#allocation5 + $0x8] sm:$0xf]
    %v98 = vld [vmem:[#allocation5 + $0xc] sm:$0xf]
    %v99 = vld [vmem:[#allocation5 + $0x10] sm:$0xf]
    %v100 = vld [vmem:[#allocation5 + $0x14] sm:$0xf]
    %v101 = vld [vmem:[#allocation5 + $0x18] sm:$0xf]
    %v102 = vld [vmem:[#allocation5 + $0x1c] sm:$0xf]
    %v103 = vld [vmem:[#allocation5 + $0x20] sm:$0xf]
    %v104 = vld [vmem:[#allocation5 + $0x24] sm:$0xf]
    %v105 = vld [vmem:[#allocation5 + $0x28] sm:$0xf]
    %v106 = vld [vmem:[#allocation5 + $0x2c] sm:$0xf]
    %v107 = vld [vmem:[#allocation5 + $0x30] sm:$0xf]
    %v108 = vld [vmem:[#allocation5 + $0x34] sm:$0xf]
    %v109 = vld [vmem:[#allocation5 + $0x38] sm:$0xf]
    %v110 = vld [vmem:[#allocation5 + $0x3c] sm:$0xf]
    %v111 = vld [vmem:[#allocation5 + $0x40] sm:$0xf]
    %v112 = vld [vmem:[#allocation5 + $0x44] sm:$0xf]
    %v113 = vld [vmem:[#allocation5 + $0x48] sm:$0xf]
    %v114 = vld [vmem:[#allocation5 + $0x4c] sm:$0xf]
    %v115 = vld [vmem:[#allocation5 + $0x50] sm:$0xf]
    %v116 = vld [vmem:[#allocation5 + $0x54] sm:$0xf]
    %v117 = vld [vmem:[#allocation5 + $0x58] sm:$0xf]
    %v118 = vld [vmem:[#allocation5 + $0x5c] sm:$0xf]
    %v119 = vld [vmem:[#allocation5 + $0x60] sm:$0xf]
    %v120 = vld [vmem:[#allocation5 + $0x64] sm:$0xf]
    %v121 = vld [vmem:[#allocation5 + $0x68] sm:$0xf]
    %v122 = vld [vmem:[#allocation5 + $0x6c] sm:$0xf]
    %v123 = vld [vmem:[#allocation5 + $0x70] sm:$0xf]
    %v124 = vld [vmem:[#allocation5 + $0x74] sm:$0xf]
    %v125 = vld [vmem:[#allocation5 + $0x78] sm:$0xf]
    %v126 = vld [vmem:[#allocation5 + $0x7c] sm:$0xf]
    %v127 = vld [vmem:[#allocation5 + $0x80] sm:$0xf]
    %v128 = vld [vmem:[#allocation5 + $0x84] sm:$0xf]
    %v129 = vld [vmem:[#allocation5 + $0x88] sm:$0xf]
    %v130 = vld [vmem:[#allocation5 + $0x8c] sm:$0xf]
    %v131 = vld [vmem:[#allocation5 + $0x90] sm:$0xf]
    %v132 = vld [vmem:[#allocation5 + $0x94] sm:$0xf]
    %v133 = vld [vmem:[#allocation5 + $0x98] sm:$0xf]
    %v134 = vld [vmem:[#allocation5 + $0x9c] sm:$0xf]
    %v135 = vld [vmem:[#allocation5 + $0xa0] sm:$0xf]
    %v136 = vld [vmem:[#allocation5 + $0xa4] sm:$0xf]
    %v137 = vld [vmem:[#allocation5 + $0xa8] sm:$0xf]
    %v138 = vld [vmem:[#allocation5 + $0xac] sm:$0xf]
    %v139 = vld [vmem:[#allocation5 + $0xb0] sm:$0xf]
    %v140 = vld [vmem:[#allocation5 + $0xb4] sm:$0xf]
    %v141 = vld [vmem:[#allocation5 + $0xb8] sm:$0xf]
    %v142 = vld [vmem:[#allocation5 + $0xbc] sm:$0xf]
    %v143 = vld [vmem:[#allocation5 + $0xc0] sm:$0xf]
    %v144 = vld [vmem:[#allocation5 + $0xc4] sm:$0xf]
    %v145 = vld [vmem:[#allocation5 + $0xc8] sm:$0xf]
    %v146 = vld [vmem:[#allocation5 + $0xcc] sm:$0xf]
    %v147 = vld [vmem:[#allocation5 + $0xd0] sm:$0xf]
    %v148 = vld [vmem:[#allocation5 + $0xd4] sm:$0xf]
    %v149 = vld [vmem:[#allocation5 + $0xd8] sm:$0xf]
    %v150 = vld [vmem:[#allocation5 + $0xdc] sm:$0xf]
    %v151 = vld [vmem:[#allocation5 + $0xe0] sm:$0xf]
    %v152 = vld [vmem:[#allocation5 + $0xe4] sm:$0xf]
    %v153 = vld [vmem:[#allocation5 + $0xe8] sm:$0xf]
    %v154 = vld [vmem:[#allocation5 + $0xec] sm:$0xf]
    %v155 = vld [vmem:[#allocation5 + $0xf0] sm:$0xf]
    %v156 = vld [vmem:[#allocation5 + $0xf4] sm:$0xf]
    %v157 = vld [vmem:[#allocation5 + $0xf8] sm:$0xf]
    %v158 = vld [vmem:[#allocation5 + $0xfc] sm:$0xf]
    %v159 = vld [vmem:[#allocation5 + $0x100] sm:$0xf]
    %v160 = vld [vmem:[#allocation5 + $0x104] sm:$0xf]
    %v161 = vld [vmem:[#allocation5 + $0x108] sm:$0xf]
    %v162 = vld [vmem:[#allocation5 + $0x10c] sm:$0xf]
    %v163 = vld [vmem:[#allocation5 + $0x110] sm:$0xf]
    %v164 = vld [vmem:[#allocation5 + $0x114] sm:$0xf]
    %v165 = vld [vmem:[#allocation5 + $0x118] sm:$0xf]
    %v166 = vld [vmem:[#allocation5 + $0x11c] sm:$0xf]
    %v167 = vld [vmem:[#allocation5 + $0x120] sm:$0xf]
    %v168 = vld [vmem:[#allocation5 + $0x124] sm:$0xf]
    %v169 = vld [vmem:[#allocation5 + $0x128] sm:$0xf]
    %v170 = vld [vmem:[#allocation5 + $0x12c] sm:$0xf]
    %v171 = vld [vmem:[#allocation5 + $0x130] sm:$0xf]
    %v172 = vld [vmem:[#allocation5 + $0x134] sm:$0xf]
    %v173 = vld [vmem:[#allocation5 + $0x138] sm:$0xf]
    %v174 = vld [vmem:[#allocation5 + $0x13c] sm:$0xf]
    %v175 = vld [vmem:[#allocation5 + $0x140] sm:$0xf]
    %v176 = vld [vmem:[#allocation5 + $0x144] sm:$0xf]
    %v177 = vld [vmem:[#allocation5 + $0x148] sm:$0xf]
    %v178 = vld [vmem:[#allocation5 + $0x14c] sm:$0xf]
    %v179 = vld [vmem:[#allocation5 + $0x150] sm:$0xf]
    %v180 = vld [vmem:[#allocation5 + $0x154] sm:$0xf]
    %v181 = vld [vmem:[#allocation5 + $0x158] sm:$0xf]
    %v182 = vld [vmem:[#allocation5 + $0x15c] sm:$0xf]
    %v183 = vld [vmem:[#allocation5 + $0x160] sm:$0xf]
    %v184 = vld [vmem:[#allocation5 + $0x164] sm:$0xf]
    %v185 = vld [vmem:[#allocation5 + $0x168] sm:$0xf]
    %v186 = vld [vmem:[#allocation5 + $0x16c] sm:$0xf]
    %v187 = vld [vmem:[#allocation5 + $0x170] sm:$0xf]
    %v188 = vld [vmem:[#allocation5 + $0x174] sm:$0xf]
    %v189 = vld [vmem:[#allocation5 + $0x178] sm:$0xf]
    %v190 = vld [vmem:[#allocation5 + $0x17c] sm:$0xf]
    %v191 = vld [vmem:[#allocation5 + $0x180] sm:$0xf]
    %v192 = vld [vmem:[#allocation5 + $0x184] sm:$0xf]
    %v193 = vld [vmem:[#allocation5 + $0x188] sm:$0xf]
    %v194 = vld [vmem:[#allocation5 + $0x18c] sm:$0xf]
    %v195 = vld [vmem:[#allocation5 + $0x190] sm:$0xf]
    %v196 = vld [vmem:[#allocation5 + $0x194] sm:$0xf]
    %v197 = vld [vmem:[#allocation5 + $0x198] sm:$0xf]
    %v198 = vld [vmem:[#allocation5 + $0x19c] sm:$0xf]
    %v199 = vld [vmem:[#allocation5 + $0x1a0] sm:$0xf]
    %v200 = vld [vmem:[#allocation5 + $0x1a4] sm:$0xf]
    %v201 = vld [vmem:[#allocation5 + $0x1a8] sm:$0xf]
    %v202 = vld [vmem:[#allocation5 + $0x1ac] sm:$0xf]
    %v203 = vld [vmem:[#allocation5 + $0x1b0] sm:$0xf]
    %v204 = vld [vmem:[#allocation5 + $0x1b4] sm:$0xf]
    %v205 = vld [vmem:[#allocation5 + $0x1b8] sm:$0xf]
    %v206 = vld [vmem:[#allocation5 + $0x1bc] sm:$0xf]
    %v207 = vld [vmem:[%s2] sm:$0x1]
    %v209 = vperm.slane %v207, 0
    %v215 = vunpack.c.l.b16 %v91
    %v216 = vunpack.c.h.b16 %v91
    %v217 = vunpack.c.l.b16 %v92
    %v218 = vunpack.c.h.b16 %v92
    %v219 = vunpack.c.l.b16 %v93
    %v220 = vunpack.c.h.b16 %v93
    %v221 = vunpack.c.l.b16 %v94
    %v222 = vpack.c.b16 %v215, %v215
    %v223 = vpack.c.b16 %v216, %v216
    %v224 = vpack.c.b16 %v217, %v217
    %v225 = vpack.c.b16 %v218, %v218
    %v226 = vpack.c.b16 %v219, %v219
    %v227 = vpack.c.b16 %v220, %v220
    %v228 = vpack.c.b16 %v221, %v221
    %v348 = vunpack.c.l.b16 %v95
    %v349 = vunpack.c.l.b16 %v96
    %v350 = vunpack.c.l.b16 %v97
    %v351 = vunpack.c.l.b16 %v98
    %v352 = vunpack.c.l.b16 %v99
    %v353 = vunpack.c.l.b16 %v100
    %v354 = vunpack.c.l.b16 %v101
    %v355 = vunpack.c.l.b16 %v102
    %v356 = vunpack.c.l.b16 %v103
    %v357 = vunpack.c.l.b16 %v104
    %v358 = vunpack.c.l.b16 %v105
    %v359 = vunpack.c.l.b16 %v106
    %v360 = vunpack.c.l.b16 %v107
    %v361 = vunpack.c.l.b16 %v108
    %v362 = vunpack.c.l.b16 %v109
    %v363 = vunpack.c.l.b16 %v110
    %v364 = vunpack.c.l.b16 %v111
    %v365 = vunpack.c.l.b16 %v112
    %v366 = vunpack.c.l.b16 %v113
    %v367 = vunpack.c.l.b16 %v114
    %v368 = vunpack.c.l.b16 %v115
    %v369 = vunpack.c.l.b16 %v116
    %v370 = vunpack.c.l.b16 %v117
    %v371 = vunpack.c.l.b16 %v118
    %v372 = vunpack.c.l.b16 %v119
    %v373 = vunpack.c.l.b16 %v120
    %v374 = vunpack.c.l.b16 %v121
    %v375 = vunpack.c.l.b16 %v122
    %v376 = vunpack.c.l.b16 %v123
    %v377 = vunpack.c.l.b16 %v124
    %v378 = vunpack.c.l.b16 %v125
    %v379 = vunpack.c.l.b16 %v126
    %v380 = vunpack.c.l.b16 %v127
    %v381 = vunpack.c.l.b16 %v128
    %v382 = vunpack.c.l.b16 %v129
    %v383 = vunpack.c.l.b16 %v130
    %v384 = vunpack.c.l.b16 %v131
    %v385 = vunpack.c.l.b16 %v132
    %v386 = vunpack.c.l.b16 %v133
    %v387 = vunpack.c.l.b16 %v134
    %v388 = vunpack.c.l.b16 %v135
    %v389 = vunpack.c.l.b16 %v136
    %v390 = vunpack.c.l.b16 %v137
    %v391 = vunpack.c.l.b16 %v138
    %v392 = vunpack.c.l.b16 %v139
    %v393 = vunpack.c.l.b16 %v140
    %v394 = vunpack.c.l.b16 %v141
    %v395 = vunpack.c.l.b16 %v142
    %v396 = vunpack.c.l.b16 %v143
    %v397 = vunpack.c.l.b16 %v144
    %v398 = vunpack.c.l.b16 %v145
    %v399 = vunpack.c.l.b16 %v146
    %v400 = vunpack.c.l.b16 %v147
    %v401 = vunpack.c.l.b16 %v148
    %v402 = vunpack.c.l.b16 %v149
    %v403 = vunpack.c.l.b16 %v150
    %v404 = vunpack.c.l.b16 %v151
    %v405 = vunpack.c.l.b16 %v152
    %v406 = vunpack.c.l.b16 %v153
    %v407 = vunpack.c.l.b16 %v154
    %v408 = vunpack.c.l.b16 %v155
    %v409 = vunpack.c.l.b16 %v156
    %v410 = vunpack.c.l.b16 %v157
    %v411 = vunpack.c.l.b16 %v158
    %v412 = vunpack.c.l.b16 %v159
    %v413 = vunpack.c.l.b16 %v160
    %v414 = vunpack.c.l.b16 %v161
    %v415 = vunpack.c.l.b16 %v162
    %v416 = vunpack.c.l.b16 %v163
    %v417 = vunpack.c.l.b16 %v164
    %v418 = vunpack.c.l.b16 %v165
    %v419 = vunpack.c.l.b16 %v166
    %v420 = vunpack.c.l.b16 %v167
    %v421 = vunpack.c.l.b16 %v168
    %v422 = vunpack.c.l.b16 %v169
    %v423 = vunpack.c.l.b16 %v170
    %v424 = vunpack.c.l.b16 %v171
    %v425 = vunpack.c.l.b16 %v172
    %v426 = vunpack.c.l.b16 %v173
    %v427 = vunpack.c.l.b16 %v174
    %v428 = vunpack.c.l.b16 %v175
    %v429 = vunpack.c.l.b16 %v176
    %v430 = vunpack.c.l.b16 %v177
    %v431 = vunpack.c.l.b16 %v178
    %v432 = vunpack.c.l.b16 %v179
    %v433 = vunpack.c.l.b16 %v180
    %v434 = vunpack.c.l.b16 %v181
    %v435 = vunpack.c.l.b16 %v182
    %v436 = vunpack.c.l.b16 %v183
    %v437 = vunpack.c.l.b16 %v184
    %v438 = vunpack.c.l.b16 %v185
    %v439 = vunpack.c.l.b16 %v186
    %v440 = vunpack.c.l.b16 %v187
    %v441 = vunpack.c.l.b16 %v188
    %v442 = vunpack.c.l.b16 %v189
    %v443 = vunpack.c.l.b16 %v190
    %v444 = vunpack.c.l.b16 %v191
    %v445 = vunpack.c.l.b16 %v192
    %v446 = vunpack.c.l.b16 %v193
    %v447 = vunpack.c.l.b16 %v194
    %v448 = vunpack.c.l.b16 %v195
    %v449 = vunpack.c.l.b16 %v196
    %v450 = vunpack.c.l.b16 %v197
    %v451 = vunpack.c.l.b16 %v198
    %v452 = vunpack.c.l.b16 %v199
    %v453 = vunpack.c.l.b16 %v200
    %v454 = vunpack.c.l.b16 %v201
    %v455 = vunpack.c.l.b16 %v202
    %v456 = vunpack.c.l.b16 %v203
    %v457 = vunpack.c.l.b16 %v204
    %v458 = vunpack.c.l.b16 %v205
    %v459 = vunpack.c.l.b16 %v206
    %v460 = vpack.c.b16 %v349, %v348
    %v461 = vpack.c.b16 %v351, %v350
    %v462 = vpack.c.b16 %v353, %v352
    %v463 = vpack.c.b16 %v355, %v354
    %v464 = vpack.c.b16 %v357, %v356
    %v465 = vpack.c.b16 %v359, %v358
    %v466 = vpack.c.b16 %v361, %v360
    %v467 = vpack.c.b16 %v363, %v362
    %v468 = vpack.c.b16 %v365, %v364
    %v469 = vpack.c.b16 %v367, %v366
    %v470 = vpack.c.b16 %v369, %v368
    %v471 = vpack.c.b16 %v371, %v370
    %v472 = vpack.c.b16 %v373, %v372
    %v473 = vpack.c.b16 %v375, %v374
    %v474 = vpack.c.b16 %v377, %v376
    %v475 = vpack.c.b16 %v379, %v378
    %v476 = vpack.c.b16 %v381, %v380
    %v477 = vpack.c.b16 %v383, %v382
    %v478 = vpack.c.b16 %v385, %v384
    %v479 = vpack.c.b16 %v387, %v386
    %v480 = vpack.c.b16 %v389, %v388
    %v481 = vpack.c.b16 %v391, %v390
    %v482 = vpack.c.b16 %v393, %v392
    %v483 = vpack.c.b16 %v395, %v394
    %v484 = vpack.c.b16 %v397, %v396
    %v485 = vpack.c.b16 %v399, %v398
    %v486 = vpack.c.b16 %v401, %v400
    %v487 = vpack.c.b16 %v403, %v402
    %v488 = vpack.c.b16 %v405, %v404
    %v489 = vpack.c.b16 %v407, %v406
    %v490 = vpack.c.b16 %v409, %v408
    %v491 = vpack.c.b16 %v411, %v410
    %v492 = vpack.c.b16 %v413, %v412
    %v493 = vpack.c.b16 %v415, %v414
    %v494 = vpack.c.b16 %v417, %v416
    %v495 = vpack.c.b16 %v419, %v418
    %v496 = vpack.c.b16 %v421, %v420
    %v497 = vpack.c.b16 %v423, %v422
    %v498 = vpack.c.b16 %v425, %v424
    %v499 = vpack.c.b16 %v427, %v426
    %v500 = vpack.c.b16 %v429, %v428
    %v501 = vpack.c.b16 %v431, %v430
    %v502 = vpack.c.b16 %v433, %v432
    %v503 = vpack.c.b16 %v435, %v434
    %v504 = vpack.c.b16 %v437, %v436
    %v505 = vpack.c.b16 %v439, %v438
    %v506 = vpack.c.b16 %v441, %v440
    %v507 = vpack.c.b16 %v443, %v442
    %v508 = vpack.c.b16 %v445, %v444
    %v509 = vpack.c.b16 %v447, %v446
    %v510 = vpack.c.b16 %v449, %v448
    %v511 = vpack.c.b16 %v451, %v450
    %v512 = vpack.c.b16 %v453, %v452
    %v513 = vpack.c.b16 %v455, %v454
    %v514 = vpack.c.b16 %v457, %v456
    %v515 = vpack.c.b16 %v459, %v458
    %572 = vmatpush.bf16.msra.mxu0 %v467
    %573 = vmatpush.bf16.msra.mxu0 %v466
    %574 = vmatpush.bf16.msra.mxu0 %v465
    %575 = vmatpush.bf16.msra.mxu0 %v464
    %576 = vmatpush.bf16.msra.mxu0 %v463
    %577 = vmatpush.bf16.msra.mxu0 %v462
    %578 = vmatpush.bf16.msra.mxu0 %v461
    %579 = vmatpush.bf16.msra.mxu0 %v460
    %580 = vmatmul.bf16.gmra.mxu0 %v222
    %v581 = vpop.f32.mrf.mxu0
    %v582 = vadd.f32 %v209, %v581
    %v583 = vpop.f32.mrf.mxu0
    %584 = vdwg.mxu0
    %585 = vmatpush.bf16.msra.mxu0 %v475
    %586 = vmatpush.bf16.msra.mxu0 %v474
    %587 = vmatpush.bf16.msra.mxu0 %v473
    %588 = vmatpush.bf16.msra.mxu0 %v472
    %589 = vmatpush.bf16.msra.mxu0 %v471
    %590 = vmatpush.bf16.msra.mxu0 %v470
    %591 = vmatpush.bf16.msra.mxu0 %v469
    %592 = vmatpush.bf16.msra.mxu0 %v468
    %593 = vmatmul.bf16.gmra.mxu0 %v223
    %v594 = vpop.f32.mrf.mxu0
    %v595 = vadd.f32 %v582, %v594
    %v596 = vpop.f32.mrf.mxu0
    %597 = vdwg.mxu0
    %598 = vmatpush.bf16.msra.mxu0 %v483
    %599 = vmatpush.bf16.msra.mxu0 %v482
    %600 = vmatpush.bf16.msra.mxu0 %v481
    %601 = vmatpush.bf16.msra.mxu0 %v480
    %602 = vmatpush.bf16.msra.mxu0 %v479
    %603 = vmatpush.bf16.msra.mxu0 %v478
    %604 = vmatpush.bf16.msra.mxu0 %v477
    %605 = vmatpush.bf16.msra.mxu0 %v476
    %606 = vmatmul.bf16.gmra.mxu0 %v224
    %v607 = vpop.f32.mrf.mxu0
    %v608 = vadd.f32 %v595, %v607
    %v609 = vpop.f32.mrf.mxu0
    %610 = vdwg.mxu0
    %611 = vmatpush.bf16.msra.mxu0 %v491
    %612 = vmatpush.bf16.msra.mxu0 %v490
    %613 = vmatpush.bf16.msra.mxu0 %v489
    %614 = vmatpush.bf16.msra.mxu0 %v488
    %615 = vmatpush.bf16.msra.mxu0 %v487
    %616 = vmatpush.bf16.msra.mxu0 %v486
    %617 = vmatpush.bf16.msra.mxu0 %v485
    %618 = vmatpush.bf16.msra.mxu0 %v484
    %619 = vmatmul.bf16.gmra.mxu0 %v225
    %v620 = vpop.f32.mrf.mxu0
    %v621 = vadd.f32 %v608, %v620
    %v622 = vpop.f32.mrf.mxu0
    %623 = vdwg.mxu0
    %624 = vmatpush.bf16.msra.mxu0 %v499
    %625 = vmatpush.bf16.msra.mxu0 %v498
    %626 = vmatpush.bf16.msra.mxu0 %v497
    %627 = vmatpush.bf16.msra.mxu0 %v496
    %628 = vmatpush.bf16.msra.mxu0 %v495
    %629 = vmatpush.bf16.msra.mxu0 %v494
    %630 = vmatpush.bf16.msra.mxu0 %v493
    %631 = vmatpush.bf16.msra.mxu0 %v492
    %632 = vmatmul.bf16.gmra.mxu0 %v226
    %v633 = vpop.f32.mrf.mxu0
    %v634 = vadd.f32 %v621, %v633
    %v635 = vpop.f32.mrf.mxu0
    %636 = vdwg.mxu0
    %637 = vmatpush.bf16.msra.mxu0 %v507
    %638 = vmatpush.bf16.msra.mxu0 %v506
    %639 = vmatpush.bf16.msra.mxu0 %v505
    %640 = vmatpush.bf16.msra.mxu0 %v504
    %641 = vmatpush.bf16.msra.mxu0 %v503
    %642 = vmatpush.bf16.msra.mxu0 %v502
    %643 = vmatpush.bf16.msra.mxu0 %v501
    %644 = vmatpush.bf16.msra.mxu0 %v500
    %645 = vmatmul.bf16.gmra.mxu0 %v227
    %v646 = vpop.f32.mrf.mxu0
    %v647 = vadd.f32 %v634, %v646
    %v648 = vpop.f32.mrf.mxu0
    %649 = vdwg.mxu0
    %650 = vmatpush.bf16.msra.mxu0 %v515
    %651 = vmatpush.bf16.msra.mxu0 %v514
    %652 = vmatpush.bf16.msra.mxu0 %v513
    %653 = vmatpush.bf16.msra.mxu0 %v512
    %654 = vmatpush.bf16.msra.mxu0 %v511
    %655 = vmatpush.bf16.msra.mxu0 %v510
    %656 = vmatpush.bf16.msra.mxu0 %v509
    %657 = vmatpush.bf16.msra.mxu0 %v508
    %658 = vmatmul.bf16.gmra.mxu0 %v228
    %v659 = vpop.f32.mrf.mxu0
    %v660 = vadd.f32 %v647, %v659
    %v661 = vpop.f32.mrf.mxu0
    %662 = vdwg.mxu0
    %v663 = vmax.f32 %v660, 0.0
    %v664 = vpack.c.bf16 %v663, %v663
    %v665 = vld [vmem:[#allocation7] sm:$0xf]
    %v666 = vld [vmem:[#allocation7 + $0x4] sm:$0xf]
    %v667 = vld [vmem:[#allocation7 + $0x8] sm:$0xf]
    %v668 = vld [vmem:[#allocation7 + $0xc] sm:$0xf]
    %v669 = vld [vmem:[#allocation7 + $0x10] sm:$0xf]
    %v670 = vld [vmem:[#allocation7 + $0x14] sm:$0xf]
    %v671 = vld [vmem:[#allocation7 + $0x18] sm:$0xf]
    %v672 = vld [vmem:[#allocation7 + $0x1c] sm:$0xf]
    %v673 = vld [vmem:[#allocation7 + $0x20] sm:$0xf]
    %v674 = vld [vmem:[#allocation7 + $0x24] sm:$0xf]
    %v675 = vld [vmem:[#allocation7 + $0x28] sm:$0xf]
    %v676 = vld [vmem:[#allocation7 + $0x2c] sm:$0xf]
    %v677 = vld [vmem:[#allocation7 + $0x30] sm:$0xf]
    %v678 = vld [vmem:[#allocation7 + $0x34] sm:$0xf]
    %v679 = vld [vmem:[#allocation7 + $0x38] sm:$0xf]
    %v680 = vld [vmem:[#allocation7 + $0x3c] sm:$0xf]
    %v681 = vld [vmem:[%s4] sm:$0x1]
    %v683 = vperm.slane %v681, 0
    %v701 = vunpack.c.l.b16 %v665
    %v702 = vunpack.c.l.b16 %v666
    %v703 = vunpack.c.l.b16 %v667
    %v704 = vunpack.c.l.b16 %v668
    %v705 = vunpack.c.l.b16 %v669
    %v706 = vunpack.c.l.b16 %v670
    %v707 = vunpack.c.l.b16 %v671
    %v708 = vunpack.c.l.b16 %v672
    %v709 = vunpack.c.l.b16 %v673
    %v710 = vunpack.c.l.b16 %v674
    %v711 = vunpack.c.l.b16 %v675
    %v712 = vunpack.c.l.b16 %v676
    %v713 = vunpack.c.l.b16 %v677
    %v714 = vunpack.c.l.b16 %v678
    %v715 = vunpack.c.l.b16 %v679
    %v716 = vunpack.c.l.b16 %v680
    %v717 = vpack.c.b16 %v702, %v701
    %v718 = vpack.c.b16 %v704, %v703
    %v719 = vpack.c.b16 %v706, %v705
    %v720 = vpack.c.b16 %v708, %v707
    %v721 = vpack.c.b16 %v710, %v709
    %v722 = vpack.c.b16 %v712, %v711
    %v723 = vpack.c.b16 %v714, %v713
    %v724 = vpack.c.b16 %v716, %v715
    %733 = vmatpush.bf16.msra.mxu0 %v724
    %734 = vmatpush.bf16.msra.mxu0 %v723
    %735 = vmatpush.bf16.msra.mxu0 %v722
    %736 = vmatpush.bf16.msra.mxu0 %v721
    %737 = vmatpush.bf16.msra.mxu0 %v720
    %738 = vmatpush.bf16.msra.mxu0 %v719
    %739 = vmatpush.bf16.msra.mxu0 %v718
    %740 = vmatpush.bf16.msra.mxu0 %v717
    %741 = vmatmul.bf16.gmra.mxu0 %v664
    %v742 = vpop.f32.mrf.mxu0
    %v743 = vadd.f32 %v683, %v742
    %v744 = vpop.f32.mrf.mxu0
    %745 = vdwg.mxu0
    %v746 = vmax.f32 %v743, 0.0
    %v747 = vpack.c.bf16 %v746, %v746
    %v748 = vld [vmem:[#allocation8] sm:$0xf]
    %v749 = vld [vmem:[#allocation8 + $0x4] sm:$0xf]
    %v750 = vld [vmem:[#allocation8 + $0x8] sm:$0xf]
    %v751 = vld [vmem:[#allocation8 + $0xc] sm:$0xf]
    %v752 = vld [vmem:[#allocation8 + $0x10] sm:$0xf]
    %v753 = vld [vmem:[#allocation8 + $0x14] sm:$0xf]
    %v754 = vld [vmem:[#allocation8 + $0x18] sm:$0xf]
    %v755 = vld [vmem:[#allocation8 + $0x1c] sm:$0xf]
    %v756 = vld [vmem:[#allocation8 + $0x20] sm:$0xf]
    %v757 = vld [vmem:[#allocation8 + $0x24] sm:$0xf]
    %v758 = vld [vmem:[#allocation8 + $0x28] sm:$0xf]
    %v759 = vld [vmem:[#allocation8 + $0x2c] sm:$0xf]
    %v760 = vld [vmem:[#allocation8 + $0x30] sm:$0xf]
    %v761 = vld [vmem:[#allocation8 + $0x34] sm:$0xf]
    %v762 = vld [vmem:[#allocation8 + $0x38] sm:$0xf]
    %v763 = vld [vmem:[#allocation8 + $0x3c] sm:$0xf]
    %v764 = vld [vmem:[%s6] sm:$0x1]
    %v766 = vperm.slane %v764, 0
    %v784 = vunpack.c.l.b16 %v748
    %v785 = vunpack.c.l.b16 %v749
    %v786 = vunpack.c.l.b16 %v750
    %v787 = vunpack.c.l.b16 %v751
    %v788 = vunpack.c.l.b16 %v752
    %v789 = vunpack.c.l.b16 %v753
    %v790 = vunpack.c.l.b16 %v754
    %v791 = vunpack.c.l.b16 %v755
    %v792 = vunpack.c.l.b16 %v756
    %v793 = vunpack.c.l.b16 %v757
    %v794 = vunpack.c.l.b16 %v758
    %v795 = vunpack.c.l.b16 %v759
    %v796 = vunpack.c.l.b16 %v760
    %v797 = vunpack.c.l.b16 %v761
    %v798 = vunpack.c.l.b16 %v762
    %v799 = vunpack.c.l.b16 %v763
    %v800 = vpack.c.b16 %v785, %v784
    %v801 = vpack.c.b16 %v787, %v786
    %v802 = vpack.c.b16 %v789, %v788
    %v803 = vpack.c.b16 %v791, %v790
    %v804 = vpack.c.b16 %v793, %v792
    %v805 = vpack.c.b16 %v795, %v794
    %v806 = vpack.c.b16 %v797, %v796
    %v807 = vpack.c.b16 %v799, %v798
    %816 = vmatpush.bf16.msra.mxu0 %v807
    %817 = vmatpush.bf16.msra.mxu0 %v806
    %818 = vmatpush.bf16.msra.mxu0 %v805
    %819 = vmatpush.bf16.msra.mxu0 %v804
    %820 = vmatpush.bf16.msra.mxu0 %v803
    %821 = vmatpush.bf16.msra.mxu0 %v802
    %822 = vmatpush.bf16.msra.mxu0 %v801
    %823 = vmatpush.bf16.msra.mxu0 %v800
    %824 = vmatmul.bf16.gmra.mxu0 %v747
    %v825 = vpop.f32.mrf.mxu0
    %v826 = vadd.f32 %v766, %v825
    %v827 = vpop.f32.mrf.mxu0
    %828 = vdwg.mxu0
    %829 = vst [vmem:[#allocation11] sm:$0xff] %v746
    %830 = vst [vmem:[#allocation10] sm:$0xff] %v826
    // Predicated region
    $region46: #{tpu_custom_call.1} parent=1 // pred_check
      _
    $region47: #{tpu_custom_call.1} parent=1 // pred_check_branch
      %832 = sbr.rel (0) target = $region49
    $region48: #{tpu_custom_call.1} parent=1 // pred_region
      %834 = vsyncadd [#allocation4], 0
      %s836 = sshll.u32 [#allocation10], 4
      %s837 = int_to_ptr.vmem [resolvable:$true] %s836
      %s838 = sshll.u32 %s7, 4
      %s839 = int_to_ptr.hbm [resolvable:$true] %s838
      %841 = dma.vmem_to_hbm [thread:$0]  %s837, 128, %s839, [#allocation4]
    $region49: #{tpu_custom_call.1} parent=1 // pred_fallthru
      _
    // Predicated region
    $region50: #{tpu_custom_call.1} parent=1 // pred_check
      _
    $region51: #{tpu_custom_call.1} parent=1 // pred_check_branch
      %843 = sbr.rel (0) target = $region53
    $region52: #{tpu_custom_call.1} parent=1 // pred_region
      %845 = vsyncadd [#allocation12], 0
      %s847 = sshll.u32 [#allocation11], 4
      %s848 = int_to_ptr.vmem [resolvable:$true] %s847
      %s849 = sshll.u32 %s8, 4
      %s850 = int_to_ptr.hbm [resolvable:$true] %s849
      %852 = dma.vmem_to_hbm [thread:$0]  %s848, 128, %s850, [#allocation12]
    $region53: #{tpu_custom_call.1} parent=1 // pred_fallthru
      _
    // Predicated region
    $region54: #{tpu_custom_call.1} parent=1 // pred_check
      _
    $region55: #{tpu_custom_call.1} parent=1 // pred_check_branch
      %854 = sbr.rel (0) target = $region57
    $region56: #{tpu_custom_call.1} parent=1 // pred_region
      %856 = dma.done [#allocation4], 128
    $region57: #{tpu_custom_call.1} parent=1 // pred_fallthru
      _
    // Predicated region
    $region58: #{tpu_custom_call.1} parent=1 // pred_check
      _
    $region59: #{tpu_custom_call.1} parent=1 // pred_check_branch
      %858 = sbr.rel (0) target = $region61
    $region60: #{tpu_custom_call.1} parent=1 // pred_region
      %860 = dma.done [#allocation12], 128
    $region61: #{tpu_custom_call.1} parent=1 // pred_fallthru
      _
    %861 = vsyncpa [#allocation3], 1
    %862 = vsyncpa [#allocation6], 1
    %863 = vsyncpa [#allocation9], 1
    %864 = vsyncpa [#allocation4], 1
    %865 = vsyncpa [#allocation12], 1

</llo_original>
